<compile_context>
chip_gen: v6e
topology: v6e:2x2x1
jax: 0.10.0
libtpu: 0.0.40
codegen_flags: <defaults>
</compile_context>

<pallas_src>
import jax
import jax.numpy as jnp
import numpy as np
from jax.experimental import pallas as pl
from jax.experimental.pallas import tpu as pltpu


def _edge_readout_kernel(e_ref, w_ref, b_ref, out_ref):
    # e_ref  : [TG, E, F]  edge features for TG graphs (input dtype, VMEM)
    # w_ref  : [F, 1]      Linear weight column (VMEM, resident)
    # b_ref  : [1]         Linear bias (SMEM scalar, f32)
    # out_ref: [TG, 2F]    fused readout: lanes [0:F]=weighted sum, [F:2F]=max
    tg, E, F = e_ref.shape

    e = e_ref[...]                                   # input dtype, for the max path
    e_f32 = e.astype(jnp.float32)

    # Per-edge logit on the MXU: [tg*E, F] @ [F, 1] -> [tg*E, 1] (f32 acc).
    # This keeps the lane-axis contraction off the XLU (which only handles the
    # cheap sublane sum/max below).
    w_col = w_ref[...].astype(jnp.float32)           # [F, 1]
    logits = jnp.dot(e_f32.reshape(tg * E, F), w_col,
                     preferred_element_type=jnp.float32) + b_ref[0]

    # tanh on the narrow [tg*E, 1] logits (EUP), broadcast back for the sum.
    ew = jnp.tanh(logits).reshape(tg, E, 1)          # [tg, E, 1], f32

    h_sum = jnp.sum(ew * e_f32, axis=1)              # [tg, F], f32 accumulation
    h_max = jnp.max(e, axis=1)                       # [tg, F], exact in input dtype

    out_ref[:, 0:F] = h_sum.astype(out_ref.dtype)    # lane-aligned full-width store
    out_ref[:, F:2 * F] = h_max.astype(out_ref.dtype)


def _pick_graphs_per_block(G, E, F, itemsize, target_block_bytes):
    """Graphs per grid step: ~target_block_bytes, sublane-dense, >=4 steps if possible."""
    bytes_per_graph = max(1, E * F * itemsize)
    tg = max(1, target_block_bytes // bytes_per_graph)
    # Keep >= 4 grid steps when G allows it (2 per TensorCore on v7x) so
    # BlockSpec double-buffering can hide the block DMA.
    tg = min(tg, max(1, pl.cdiv(G, 4)))
    # Output block is (tg, 2F): tg must be a multiple of 8 (sublane-dense,
    # unmasked stores) or equal to G.
    if tg < G:
        tg = max(8, (tg // 8) * 8)
    tg = min(tg, G)
    if tg != G and tg % 8 != 0:
        tg = min(G, ((tg + 7) // 8) * 8)
    return int(tg)


def edge_weighted_sum_and_max(edge_feats, weight, bias,
                              *, target_block_bytes=1 * 1024 * 1024):
    """edge_feats: [G, E, F]; weight: [F, 1]; bias: [1] -> out: [G, 2F]."""
    G, E, F = edge_feats.shape
    itemsize = jnp.dtype(edge_feats.dtype).itemsize
    tg = _pick_graphs_per_block(G, E, F, itemsize, target_block_bytes)
    grid_g = pl.cdiv(G, tg)

    w_col = weight.reshape(F, 1)                         # MXU-ready weight column
    bias_smem = bias.reshape(1).astype(jnp.float32)      # scalar -> SMEM

    cost = pl.CostEstimate(
        flops=4 * G * E * F,                 # logits matmul + weighted sum
        transcendentals=G * E,               # one tanh per edge
        bytes_accessed=G * E * F * itemsize  # edge features in
        + G * 2 * F * itemsize               # fused output out
        + F * 4 + 4,                         # weight + bias
    )

    out = pl.pallas_call(
        _edge_readout_kernel,
        out_shape=jax.ShapeDtypeStruct((G, 2 * F), edge_feats.dtype),
        grid_spec=pltpu.PrefetchScalarGridSpec(
            num_scalar_prefetch=0,
            grid=(grid_g,),
            in_specs=[
                pl.BlockSpec((tg, E, F), lambda g: (g, 0, 0)),      # TG graphs / step
                pl.BlockSpec((F, 1), lambda g: (0, 0)),             # weight column (resident)
                pl.BlockSpec(memory_space=pltpu.MemorySpace.SMEM),  # bias scalar
            ],
            out_specs=pl.BlockSpec((tg, 2 * F), lambda g: (g, 0)),  # fused, lane-dense
        ),
        compiler_params=pltpu.CompilerParams(
            dimension_semantics=("parallel",),
        ),
        cost_estimate=cost,
    )(edge_feats, w_col, bias_smem)

    # TODO(synk): real DGL batches with ragged / padded edge counts need a
    # per-edge validity mask (zero for the weighted sum, -inf for the max).
    return out


def _reference(edge_feats, weight, bias):
    # pure-JAX reference for sanity checking
    e = edge_feats.astype(jnp.float32)
    w = jnp.tanh(jnp.einsum("gef,fo->geo", e, weight.astype(jnp.float32)) + bias)
    h_sum = jnp.sum(w * e, axis=1)
    h_max = jnp.max(e, axis=1)
    return jnp.concatenate([h_sum, h_max], axis=1)


if __name__ == "__main__":
    key = jax.random.PRNGKey(0)
    k_e, k_w, k_b = jax.random.split(key, 3)

    # G graphs, E edges per graph, F = in_feats (128 keeps the lane axis dense).
    G, E, F = 8, 16, 128

    edge_feats = jax.random.normal(k_e, (G, E, F), dtype=jnp.float32)
    # deterministic init mimicking nn.Linear(in_feats, 1): U(-1/sqrt(F), 1/sqrt(F))
    bound = 1.0 / np.sqrt(F)
    weight = jax.random.uniform(k_w, (F, 1), minval=-bound, maxval=bound,
                                dtype=jnp.float32)
    bias = jax.random.uniform(k_b, (1,), minval=-bound, maxval=bound,
                              dtype=jnp.float32)

    out = edge_weighted_sum_and_max(edge_feats, weight, bias)
    out = jax.block_until_ready(out)

    ref = _reference(edge_feats, weight, bias)
    np.testing.assert_allclose(np.asarray(out), np.asarray(ref),
                               rtol=1e-5, atol=1e-4)
    assert out.shape == (G, 2 * F)
    print("KERNEL_OK")
</pallas_src>

<mosaic_0001>
module attributes {stable_mosaic.version = 11 : i64} {
  func.func @_edge_readout_kernel(%arg0: i32, %arg1: memref<8x16x128xf32, #tpu.memory_space<vmem>>, %arg2: memref<128x1xf32, #tpu.memory_space<vmem>>, %arg3: memref<1xf32, #tpu.memory_space<smem>>, %arg4: memref<8x256xf32, #tpu.memory_space<vmem>>) attributes {dimension_semantics = [#tpu.dimension_semantics<parallel>], iteration_bounds = array<i64: 1>, scalar_prefetch = 0 : i64, scratch_operands = 0 : i64, tpu.core_type = #tpu.core_type<tc>, window_params = [{transform_indices = @transform_0, window_bounds = array<i64: 8, 16, 128>}, {pipeline_mode = #tpu.pipeline_mode<synchronous>, transform_indices = @transform_1, window_bounds = array<i64: 128, 1>}, {transform_indices = @transform_2, window_bounds = array<i64: 1>}, {transform_indices = @transform_3, window_bounds = array<i64: 8, 256>}]} {
    %c0 = arith.constant 0 : index
    %c0_0 = arith.constant 0 : index
    %c0_1 = arith.constant 0 : index
    %0 = vector.load %arg1[%c0, %c0_0, %c0_1] : memref<8x16x128xf32, #tpu.memory_space<vmem>>, vector<8x16x128xf32>
    %c0_2 = arith.constant 0 : index
    %c0_3 = arith.constant 0 : index
    %1 = vector.load %arg2[%c0_2, %c0_3] : memref<128x1xf32, #tpu.memory_space<vmem>>, vector<128x1xf32>
    %2 = vector.shape_cast %0 : vector<8x16x128xf32> to vector<128x128xf32>
    %cst = arith.constant dense<0.000000e+00> : vector<128x1xf32>
    %3 = tpu.matmul %2, %1, %cst {dimension_numbers = #tpu.dot_dimension_numbers<[1], [0], [0], [1], [0, 0, 1, 1], [], []>} : vector<128x128xf32>, vector<128x1xf32>, vector<128x1xf32> -> vector<128x1xf32>
    %c0_4 = arith.constant 0 : index
    %4 = memref.load %arg3[%c0_4] : memref<1xf32, #tpu.memory_space<smem>>
    %5 = vector.broadcast %4 : f32 to vector<128x1xf32>
    %6 = arith.addf %3, %5 : vector<128x1xf32>
    %7 = math.tanh %6 : vector<128x1xf32>
    %8 = vector.shape_cast %7 : vector<128x1xf32> to vector<8x16x1xf32>
    %9 = vector.broadcast %8 : vector<8x16x1xf32> to vector<8x16x128xf32>
    %10 = arith.mulf %9, %0 : vector<8x16x128xf32>
    %cst_5 = arith.constant dense<0.000000e+00> : vector<8x128xf32>
    %11 = vector.multi_reduction <add>, %10, %cst_5 [1] : vector<8x16x128xf32> to vector<8x128xf32>
    %cst_6 = arith.constant dense<0xFF800000> : vector<8x128xf32>
    %12 = vector.multi_reduction <maximumf>, %0, %cst_6 [1] : vector<8x16x128xf32> to vector<8x128xf32>
    %c0_7 = arith.constant 0 : index
    %c0_8 = arith.constant 0 : index
    %13 = vector.load %arg4[%c0_7, %c0_8] : memref<8x256xf32, #tpu.memory_space<vmem>>, vector<8x128xf32>
    tpu.vector_store %arg4[%c0_7, %c0_8], %11 {strides = array<i32>} : memref<8x256xf32, #tpu.memory_space<vmem>>, vector<8x128xf32>,
    %c0_9 = arith.constant 0 : index
    %c128 = arith.constant 128 : index
    %14 = vector.load %arg4[%c0_9, %c128] : memref<8x256xf32, #tpu.memory_space<vmem>>, vector<8x128xf32>
    tpu.vector_store %arg4[%c0_9, %c128], %12 {strides = array<i32>} : memref<8x256xf32, #tpu.memory_space<vmem>>, vector<8x128xf32>,
    return
  }
  func.func @transform_0(%arg0: i32) -> (i32, i32, i32) {
    %c0_i32 = arith.constant 0 : i32
    %c0_i32_0 = arith.constant 0 : i32
    %c0_i32_1 = arith.constant 0 : i32
    return %arg0, %c0_i32, %c0_i32_0 : i32, i32, i32
  }
  func.func @transform_1(%arg0: i32) -> (i32, i32) {
    %c0_i32 = arith.constant 0 : i32
    %c0_i32_0 = arith.constant 0 : i32
    %c0_i32_1 = arith.constant 0 : i32
    return %c0_i32, %c0_i32_0 : i32, i32
  }
  func.func @transform_2(%arg0: i32) -> i32 {
    %c0_i32 = arith.constant 0 : i32
    %c0_i32_0 = arith.constant 0 : i32
    return %c0_i32 : i32
  }
  func.func @transform_3(%arg0: i32) -> (i32, i32) {
    %c0_i32 = arith.constant 0 : i32
    %c0_i32_0 = arith.constant 0 : i32
    return %arg0, %c0_i32 : i32, i32
  }
}

</mosaic_0001>

<llo_original>
// kernel: tpu_custom_call.1
$region0: #{tpu_custom_call.1}
  #allocation0 [shape = 'u32[]', space=smem, size = 0x4, offset = 0x4, fixed_abs, tag = 'smem constant byte address 0x4 - core index']
  #allocation1 [shape = 'u32[144,128]{1,0:T(1,128)}', space=vmem, size = 0x12000, scoped, tag = 'internal scratch']
  #allocation2 [shape = 'f32[1]{0:T(128)S(6)}', space=smem, size = 0x200, scoped, tag = 'scoped memory for tpu_custom_call.1']
  %s0 = inlined_call_operand.vmem [shape: f32[8,16,128], index: 0, kind: input, shape index: {}]
  %s1 = inlined_call_operand.vmem [shape: f32[128,1], index: 1, kind: input, shape index: {}]
  %s2 = inlined_call_operand.<no memory space> [shape: f32[1], index: 2, kind: input, shape index: {}]
  %s3 = inlined_call_operand.hbm [shape: f32[8,256], index: 3, kind: output, shape index: {}]
  %s4 = sld [smem:[#allocation0]]
  $region22: #{tpu_custom_call.1} parent=0
    _
  %s6 = ssub.s32 1, %s4
  %s7 = scalar_select 0, %s6, %s4
  %8 = sst [smem:[#allocation2]] %s2
  $region1: #{tpu_custom_call.1} parent=0
    #allocation3 [shape = 'u8[8192]{0}', space=vmem, size = 0x2000, scoped, tag = 'output window, operand 0, single buffered']
    #allocation4 [shape = 's32[1]{0}', space=sflag, size = 0x4, scoped, tag = 'scoped memory for tpu_custom_call.1']
    %9 = vsyncpa [#allocation4], 0
    // Predicated region
    $region2: #{tpu_custom_call.1} parent=1 // pred_check
      _
    $region3: #{tpu_custom_call.1} parent=1 // pred_check_branch
      %11 = sbr.rel (0) target = $region5
    $region4: #{tpu_custom_call.1} parent=1 // pred_region
      _
    $region5: #{tpu_custom_call.1} parent=1 // pred_fallthru
      _
    // Predicated region
    $region6: #{tpu_custom_call.1} parent=1 // pred_check
      _
    $region7: #{tpu_custom_call.1} parent=1 // pred_check_branch
      %13 = sbr.rel (0) target = $region9
    $region8: #{tpu_custom_call.1} parent=1 // pred_region
      _
    $region9: #{tpu_custom_call.1} parent=1 // pred_fallthru
      _
    // Predicated region
    $region10: #{tpu_custom_call.1} parent=1 // pred_check
      _
    $region11: #{tpu_custom_call.1} parent=1 // pred_check_branch
      %15 = sbr.rel (0) target = $region13
    $region12: #{tpu_custom_call.1} parent=1 // pred_region
      _
    $region13: #{tpu_custom_call.1} parent=1 // pred_fallthru
      _
    %v16 = vld [vmem:[%s0] sm:$0xff]
    %v17 = vld [vmem:[%s0 + $0x8] sm:$0xff]
    %v18 = vld [vmem:[%s0 + $0x10] sm:$0xff]
    %v19 = vld [vmem:[%s0 + $0x18] sm:$0xff]
    %v20 = vld [vmem:[%s0 + $0x20] sm:$0xff]
    %v21 = vld [vmem:[%s0 + $0x28] sm:$0xff]
    %v22 = vld [vmem:[%s0 + $0x30] sm:$0xff]
    %v23 = vld [vmem:[%s0 + $0x38] sm:$0xff]
    %v24 = vld [vmem:[%s0 + $0x40] sm:$0xff]
    %v25 = vld [vmem:[%s0 + $0x48] sm:$0xff]
    %v26 = vld [vmem:[%s0 + $0x50] sm:$0xff]
    %v27 = vld [vmem:[%s0 + $0x58] sm:$0xff]
    %v28 = vld [vmem:[%s0 + $0x60] sm:$0xff]
    %v29 = vld [vmem:[%s0 + $0x68] sm:$0xff]
    %v30 = vld [vmem:[%s0 + $0x70] sm:$0xff]
    %v31 = vld [vmem:[%s0 + $0x78] sm:$0xff]
    %v32 = vld [vmem:[%s1] sm:$0xff]
    %v33 = vld [vmem:[%s1 + $0x8] sm:$0xff]
    %v34 = vld [vmem:[%s1 + $0x10] sm:$0xff]
    %v35 = vld [vmem:[%s1 + $0x18] sm:$0xff]
    %v36 = vld [vmem:[%s1 + $0x20] sm:$0xff]
    %v37 = vld [vmem:[%s1 + $0x28] sm:$0xff]
    %v38 = vld [vmem:[%s1 + $0x30] sm:$0xff]
    %v39 = vld [vmem:[%s1 + $0x38] sm:$0xff]
    %v40 = vld [vmem:[%s1 + $0x40] sm:$0xff]
    %v41 = vld [vmem:[%s1 + $0x48] sm:$0xff]
    %v42 = vld [vmem:[%s1 + $0x50] sm:$0xff]
    %v43 = vld [vmem:[%s1 + $0x58] sm:$0xff]
    %v44 = vld [vmem:[%s1 + $0x60] sm:$0xff]
    %v45 = vld [vmem:[%s1 + $0x68] sm:$0xff]
    %v46 = vld [vmem:[%s1 + $0x70] sm:$0xff]
    %v47 = vld [vmem:[%s1 + $0x78] sm:$0xff]
    %s48 = sld [smem:[#allocation2]]
    %v49 = vstv %s48
    %50 = vmatprep.subr.mxu0 0.0
    %51 = vmatpush1.msra.mxu0 %v47
    %52 = vmatprep.subr.mxu0 0.0
    %53 = vmatpush1.msra.mxu0 %v46
    %54 = vmatprep.subr.mxu0 0.0
    %55 = vmatpush1.msra.mxu0 %v45
    %56 = vmatprep.subr.mxu0 0.0
    %57 = vmatpush1.msra.mxu0 %v44
    %58 = vmatprep.subr.mxu0 0.0
    %59 = vmatpush1.msra.mxu0 %v43
    %60 = vmatprep.subr.mxu0 0.0
    %61 = vmatpush1.msra.mxu0 %v42
    %62 = vmatprep.subr.mxu0 0.0
    %63 = vmatpush1.msra.mxu0 %v41
    %64 = vmatprep.subr.mxu0 0.0
    %65 = vmatpush1.msra.mxu0 %v40
    %66 = vmatprep.subr.mxu0 0.0
    %67 = vmatpush1.msra.mxu0 %v39
    %68 = vmatprep.subr.mxu0 0.0
    %69 = vmatpush1.msra.mxu0 %v38
    %70 = vmatprep.subr.mxu0 0.0
    %71 = vmatpush1.msra.mxu0 %v37
    %72 = vmatprep.subr.mxu0 0.0
    %73 = vmatpush1.msra.mxu0 %v36
    %74 = vmatprep.subr.mxu0 0.0
    %75 = vmatpush1.msra.mxu0 %v35
    %76 = vmatprep.subr.mxu0 0.0
    %77 = vmatpush1.msra.mxu0 %v34
    %78 = vmatprep.subr.mxu0 0.0
    %79 = vmatpush1.msra.mxu0 %v33
    %80 = vmatprep.subr.mxu0 0.0
    %81 = vmatpush1.msra.mxu0 %v32
    %82 = vmatprep.subr.mxu0 0.0
    %83 = vmatpush2.msra.mxu0 0.0
    %84 = vmatprep.subr.mxu0 0.0
    %85 = vmatpush2.msra.mxu0 0.0
    %86 = vmatprep.subr.mxu0 0.0
    %87 = vmatpush2.msra.mxu0 0.0
    %88 = vmatprep.subr.mxu0 0.0
    %89 = vmatpush2.msra.mxu0 0.0
    %90 = vmatprep.subr.mxu0 0.0
    %91 = vmatpush2.msra.mxu0 0.0
    %92 = vmatprep.subr.mxu0 0.0
    %93 = vmatpush2.msra.mxu0 0.0
    %94 = vmatprep.subr.mxu0 0.0
    %95 = vmatpush2.msra.mxu0 0.0
    %96 = vmatprep.subr.mxu0 0.0
    %97 = vmatpush2.msra.mxu0 0.0
    %98 = vmatprep.subr.mxu0 0.0
    %99 = vmatpush2.msra.mxu0 0.0
    %100 = vmatprep.subr.mxu0 0.0
    %101 = vmatpush2.msra.mxu0 0.0
    %102 = vmatprep.subr.mxu0 0.0
    %103 = vmatpush2.msra.mxu0 0.0
    %104 = vmatprep.subr.mxu0 0.0
    %105 = vmatpush2.msra.mxu0 0.0
    %106 = vmatprep.subr.mxu0 0.0
    %107 = vmatpush2.msra.mxu0 0.0
    %108 = vmatprep.subr.mxu0 0.0
    %109 = vmatpush2.msra.mxu0 0.0
    %110 = vmatprep.subr.mxu0 0.0
    %111 = vmatpush2.msra.mxu0 0.0
    %112 = vmatprep.subr.mxu0 0.0
    %113 = vmatpush2.msra.mxu0 0.0
    %114 = vmatprep.mubr.f32.mxu0 0.0
    %115 = vmatmul.mubr.f32.gmra.mxu0 %v16
    %v116 = vpop.f32.mrf.mxu0
    %v117 = vadd.f32 %v49, %v116
    %v118 = vpop.f32.mrf.mxu0
    %119 = vmatprep.mubr.f32.mxu0 0.0
    %120 = vmatmul.mubr.f32.gmra.mxu0 %v17
    %v121 = vpop.f32.mrf.mxu0
    %v122 = vadd.f32 %v49, %v121
    %v123 = vpop.f32.mrf.mxu0
    %124 = vmatprep.mubr.f32.mxu0 0.0
    %125 = vmatmul.mubr.f32.gmra.mxu0 %v18
    %v126 = vpop.f32.mrf.mxu0
    %v127 = vadd.f32 %v49, %v126
    %v128 = vpop.f32.mrf.mxu0
    %129 = vmatprep.mubr.f32.mxu0 0.0
    %130 = vmatmul.mubr.f32.gmra.mxu0 %v19
    %v131 = vpop.f32.mrf.mxu0
    %v132 = vadd.f32 %v49, %v131
    %v133 = vpop.f32.mrf.mxu0
    %134 = vmatprep.mubr.f32.mxu0 0.0
    %135 = vmatmul.mubr.f32.gmra.mxu0 %v20
    %v136 = vpop.f32.mrf.mxu0
    %v137 = vadd.f32 %v49, %v136
    %v138 = vpop.f32.mrf.mxu0
    %139 = vmatprep.mubr.f32.mxu0 0.0
    %140 = vmatmul.mubr.f32.gmra.mxu0 %v21
    %v141 = vpop.f32.mrf.mxu0
    %v142 = vadd.f32 %v49, %v141
    %v143 = vpop.f32.mrf.mxu0
    %144 = vmatprep.mubr.f32.mxu0 0.0
    %145 = vmatmul.mubr.f32.gmra.mxu0 %v22
    %v146 = vpop.f32.mrf.mxu0
    %v147 = vadd.f32 %v49, %v146
    %v148 = vpop.f32.mrf.mxu0
    %149 = vmatprep.mubr.f32.mxu0 0.0
    %150 = vmatmul.mubr.f32.gmra.mxu0 %v23
    %v151 = vpop.f32.mrf.mxu0
    %v152 = vadd.f32 %v49, %v151
    %v153 = vpop.f32.mrf.mxu0
    %154 = vmatprep.mubr.f32.mxu0 0.0
    %155 = vmatmul.mubr.f32.gmra.mxu0 %v24
    %v156 = vpop.f32.mrf.mxu0
    %v157 = vadd.f32 %v49, %v156
    %v158 = vpop.f32.mrf.mxu0
    %159 = vmatprep.mubr.f32.mxu0 0.0
    %160 = vmatmul.mubr.f32.gmra.mxu0 %v25
    %v161 = vpop.f32.mrf.mxu0
    %v162 = vadd.f32 %v49, %v161
    %v163 = vpop.f32.mrf.mxu0
    %164 = vmatprep.mubr.f32.mxu0 0.0
    %165 = vmatmul.mubr.f32.gmra.mxu0 %v26
    %v166 = vpop.f32.mrf.mxu0
    %v167 = vadd.f32 %v49, %v166
    %v168 = vpop.f32.mrf.mxu0
    %169 = vmatprep.mubr.f32.mxu0 0.0
    %170 = vmatmul.mubr.f32.gmra.mxu0 %v27
    %v171 = vpop.f32.mrf.mxu0
    %v172 = vadd.f32 %v49, %v171
    %v173 = vpop.f32.mrf.mxu0
    %174 = vmatprep.mubr.f32.mxu0 0.0
    %175 = vmatmul.mubr.f32.gmra.mxu0 %v28
    %v176 = vpop.f32.mrf.mxu0
    %v177 = vadd.f32 %v49, %v176
    %v178 = vpop.f32.mrf.mxu0
    %179 = vmatprep.mubr.f32.mxu0 0.0
    %180 = vmatmul.mubr.f32.gmra.mxu0 %v29
    %v181 = vpop.f32.mrf.mxu0
    %v182 = vadd.f32 %v49, %v181
    %v183 = vpop.f32.mrf.mxu0
    %184 = vmatprep.mubr.f32.mxu0 0.0
    %185 = vmatmul.mubr.f32.gmra.mxu0 %v30
    %v186 = vpop.f32.mrf.mxu0
    %v187 = vadd.f32 %v49, %v186
    %v188 = vpop.f32.mrf.mxu0
    %189 = vmatprep.mubr.f32.mxu0 0.0
    %190 = vmatmul.mubr.f32.gmra.mxu0 %v31
    %v191 = vpop.f32.mrf.mxu0
    %v192 = vadd.f32 %v49, %v191
    %v193 = vpop.f32.mrf.mxu0
    %194 = vdwg.mxu0
    %v195 = vtanh.pop %v117
    %v196 = vtanh.pop %v122
    %v197 = vtanh.pop %v127
    %v198 = vtanh.pop %v132
    %v199 = vtanh.pop %v137
    %v200 = vtanh.pop %v142
    %v201 = vtanh.pop %v147
    %v202 = vtanh.pop %v152
    %v203 = vtanh.pop %v157
    %v204 = vtanh.pop %v162
    %v205 = vtanh.pop %v167
    %v206 = vtanh.pop %v172
    %v207 = vtanh.pop %v177
    %v208 = vtanh.pop %v182
    %v209 = vtanh.pop %v187
    %v210 = vtanh.pop %v192
    %212 = vset.pattern.permute.xlu0 0
    %213 = vperm.xlu0 %212, %v195
    %v214 = vpop.permute.xlu0 %213
    %217 = vset.pattern.permute.xlu0 0
    %218 = vperm.xlu0 %217, %v196
    %v219 = vpop.permute.xlu0 %218
    %222 = vset.pattern.permute.xlu0 0
    %223 = vperm.xlu0 %222, %v197
    %v224 = vpop.permute.xlu0 %223
    %227 = vset.pattern.permute.xlu0 0
    %228 = vperm.xlu0 %227, %v198
    %v229 = vpop.permute.xlu0 %228
    %232 = vset.pattern.permute.xlu0 0
    %233 = vperm.xlu0 %232, %v199
    %v234 = vpop.permute.xlu0 %233
    %237 = vset.pattern.permute.xlu0 0
    %238 = vperm.xlu0 %237, %v200
    %v239 = vpop.permute.xlu0 %238
    %242 = vset.pattern.permute.xlu0 0
    %243 = vperm.xlu0 %242, %v201
    %v244 = vpop.permute.xlu0 %243
    %247 = vset.pattern.permute.xlu0 0
    %248 = vperm.xlu0 %247, %v202
    %v249 = vpop.permute.xlu0 %248
    %252 = vset.pattern.permute.xlu0 0
    %253 = vperm.xlu0 %252, %v203
    %v254 = vpop.permute.xlu0 %253
    %257 = vset.pattern.permute.xlu0 0
    %258 = vperm.xlu0 %257, %v204
    %v259 = vpop.permute.xlu0 %258
    %262 = vset.pattern.permute.xlu0 0
    %263 = vperm.xlu0 %262, %v205
    %v264 = vpop.permute.xlu0 %263
    %267 = vset.pattern.permute.xlu0 0
    %268 = vperm.xlu0 %267, %v206
    %v269 = vpop.permute.xlu0 %268
    %272 = vset.pattern.permute.xlu0 0
    %273 = vperm.xlu0 %272, %v207
    %v274 = vpop.permute.xlu0 %273
    %277 = vset.pattern.permute.xlu0 0
    %278 = vperm.xlu0 %277, %v208
    %v279 = vpop.permute.xlu0 %278
    %282 = vset.pattern.permute.xlu0 0
    %283 = vperm.xlu0 %282, %v209
    %v284 = vpop.permute.xlu0 %283
    %287 = vset.pattern.permute.xlu0 0
    %288 = vperm.xlu0 %287, %v210
    %v289 = vpop.permute.xlu0 %288
    %v291 = vmul.f32 %v214, %v16
    %v292 = vmul.f32 %v219, %v17
    %v293 = vmul.f32 %v224, %v18
    %v294 = vmul.f32 %v229, %v19
    %v295 = vmul.f32 %v234, %v20
    %v296 = vmul.f32 %v239, %v21
    %v297 = vmul.f32 %v244, %v22
    %v298 = vmul.f32 %v249, %v23
    %v299 = vmul.f32 %v254, %v24
    %v300 = vmul.f32 %v259, %v25
    %v301 = vmul.f32 %v264, %v26
    %v302 = vmul.f32 %v269, %v27
    %v303 = vmul.f32 %v274, %v28
    %v304 = vmul.f32 %v279, %v29
    %v305 = vmul.f32 %v284, %v30
    %v306 = vmul.f32 %v289, %v31
    %v307 = vadd.f32 %v291, %v292
    %v308 = vrot.slane %v307, 4
    %v309 = vadd.f32 %v307, %v308
    %v310 = vrot.slane %v309, 2
    %v311 = vadd.f32 %v309, %v310
    %v312 = vrot.slane %v311, 1
    %v313 = vadd.f32 %v311, %v312
    %v314 = vadd.f32 %v293, %v294
    %v315 = vrot.slane %v314, 4
    %v316 = vadd.f32 %v314, %v315
    %v317 = vrot.slane %v316, 2
    %v318 = vadd.f32 %v316, %v317
    %v319 = vrot.slane %v318, 1
    %v320 = vadd.f32 %v318, %v319
    %v321 = vadd.f32 %v295, %v296
    %v322 = vrot.slane %v321, 4
    %v323 = vadd.f32 %v321, %v322
    %v324 = vrot.slane %v323, 2
    %v325 = vadd.f32 %v323, %v324
    %v326 = vrot.slane %v325, 1
    %v327 = vadd.f32 %v325, %v326
    %v328 = vadd.f32 %v297, %v298
    %v329 = vrot.slane %v328, 4
    %v330 = vadd.f32 %v328, %v329
    %v331 = vrot.slane %v330, 2
    %v332 = vadd.f32 %v330, %v331
    %v333 = vrot.slane %v332, 1
    %v334 = vadd.f32 %v332, %v333
    %v335 = vadd.f32 %v299, %v300
    %v336 = vrot.slane %v335, 4
    %v337 = vadd.f32 %v335, %v336
    %v338 = vrot.slane %v337, 2
    %v339 = vadd.f32 %v337, %v338
    %v340 = vrot.slane %v339, 1
    %v341 = vadd.f32 %v339, %v340
    %v342 = vadd.f32 %v301, %v302
    %v343 = vrot.slane %v342, 4
    %v344 = vadd.f32 %v342, %v343
    %v345 = vrot.slane %v344, 2
    %v346 = vadd.f32 %v344, %v345
    %v347 = vrot.slane %v346, 1
    %v348 = vadd.f32 %v346, %v347
    %v349 = vadd.f32 %v303, %v304
    %v350 = vrot.slane %v349, 4
    %v351 = vadd.f32 %v349, %v350
    %v352 = vrot.slane %v351, 2
    %v353 = vadd.f32 %v351, %v352
    %v354 = vrot.slane %v353, 1
    %v355 = vadd.f32 %v353, %v354
    %v356 = vadd.f32 %v305, %v306
    %v357 = vrot.slane %v356, 4
    %v358 = vadd.f32 %v356, %v357
    %v359 = vrot.slane %v358, 2
    %v360 = vadd.f32 %v358, %v359
    %v361 = vrot.slane %v360, 1
    %v362 = vadd.f32 %v360, %v361
    %v363 = vmax.f32 %v16, %v17
    %v364 = vrot.slane %v363, 4
    %v365 = vmax.f32 %v363, %v364
    %v366 = vrot.slane %v365, 2
    %v367 = vmax.f32 %v365, %v366
    %v368 = vrot.slane %v367, 1
    %v369 = vmax.f32 %v367, %v368
    %v370 = vmax.f32 %v18, %v19
    %v371 = vrot.slane %v370, 4
    %v372 = vmax.f32 %v370, %v371
    %v373 = vrot.slane %v372, 2
    %v374 = vmax.f32 %v372, %v373
    %v375 = vrot.slane %v374, 1
    %v376 = vmax.f32 %v374, %v375
    %v377 = vmax.f32 %v20, %v21
    %v378 = vrot.slane %v377, 4
    %v379 = vmax.f32 %v377, %v378
    %v380 = vrot.slane %v379, 2
    %v381 = vmax.f32 %v379, %v380
    %v382 = vrot.slane %v381, 1
    %v383 = vmax.f32 %v381, %v382
    %v384 = vmax.f32 %v22, %v23
    %v385 = vrot.slane %v384, 4
    %v386 = vmax.f32 %v384, %v385
    %v387 = vrot.slane %v386, 2
    %v388 = vmax.f32 %v386, %v387
    %v389 = vrot.slane %v388, 1
    %v390 = vmax.f32 %v388, %v389
    %v391 = vmax.f32 %v24, %v25
    %v392 = vrot.slane %v391, 4
    %v393 = vmax.f32 %v391, %v392
    %v394 = vrot.slane %v393, 2
    %v395 = vmax.f32 %v393, %v394
    %v396 = vrot.slane %v395, 1
    %v397 = vmax.f32 %v395, %v396
    %v398 = vmax.f32 %v26, %v27
    %v399 = vrot.slane %v398, 4
    %v400 = vmax.f32 %v398, %v399
    %v401 = vrot.slane %v400, 2
    %v402 = vmax.f32 %v400, %v401
    %v403 = vrot.slane %v402, 1
    %v404 = vmax.f32 %v402, %v403
    %v405 = vmax.f32 %v28, %v29
    %v406 = vrot.slane %v405, 4
    %v407 = vmax.f32 %v405, %v406
    %v408 = vrot.slane %v407, 2
    %v409 = vmax.f32 %v407, %v408
    %v410 = vrot.slane %v409, 1
    %v411 = vmax.f32 %v409, %v410
    %v412 = vmax.f32 %v30, %v31
    %v413 = vrot.slane %v412, 4
    %v414 = vmax.f32 %v412, %v413
    %v415 = vrot.slane %v414, 2
    %v416 = vmax.f32 %v414, %v415
    %v417 = vrot.slane %v416, 1
    %v418 = vmax.f32 %v416, %v417
    %vm427 = vcmask 1041409
    %v428 = vsel %vm427, %v320, %v313
    %vm429 = vcmask 1042434
    %v430 = vsel %vm429, %v327, %v428
    %vm431 = vcmask 1043459
    %v432 = vsel %vm431, %v334, %v430
    %vm433 = vcmask 1044484
    %v434 = vsel %vm433, %v341, %v432
    %vm435 = vcmask 1045509
    %v436 = vsel %vm435, %v348, %v434
    %vm437 = vcmask 1046534
    %v438 = vsel %vm437, %v355, %v436
    %vm439 = vcmask 1047559
    %v440 = vsel %vm439, %v362, %v438
    %442 = vst [vmem:[#allocation3] sm:$0xff] %v440
    %v451 = vsel %vm427, %v376, %v369
    %v452 = vsel %vm429, %v383, %v451
    %v453 = vsel %vm431, %v390, %v452
    %v454 = vsel %vm433, %v397, %v453
    %v455 = vsel %vm435, %v404, %v454
    %v456 = vsel %vm437, %v411, %v455
    %v457 = vsel %vm439, %v418, %v456
    %459 = vst [vmem:[#allocation3 + $0x8] sm:$0xff] %v457
    // Predicated region
    $region14: #{tpu_custom_call.1} parent=1 // pred_check
      _
    $region15: #{tpu_custom_call.1} parent=1 // pred_check_branch
      %461 = sbr.rel (0) target = $region17
    $region16: #{tpu_custom_call.1} parent=1 // pred_region
      %s463 = ssub.s32 256, 256
      %464 = vsyncadd [#allocation4], %s463
      %s466 = sshll.u32 [#allocation3], 4
      %s467 = int_to_ptr.vmem [resolvable:$true] %s466
      %469 = dma.vmem_to_hbm [thread:$0]  %s467, 256, %s3, [#allocation4]
    $region17: #{tpu_custom_call.1} parent=1 // pred_fallthru
      _
    // Predicated region
    $region18: #{tpu_custom_call.1} parent=1 // pred_check
      _
    $region19: #{tpu_custom_call.1} parent=1 // pred_check_branch
      %471 = sbr.rel (0) target = $region21
    $region20: #{tpu_custom_call.1} parent=1 // pred_region
      %472 = dma.done [#allocation4], 256
    $region21: #{tpu_custom_call.1} parent=1 // pred_fallthru
      _
    %473 = vsyncpa [#allocation4], 1

</llo_original>
